<compile_context>
chip_gen: v6e
topology: v6e:2x2x1
jax: 0.10.0
libtpu: 0.0.40
codegen_flags: <defaults>
</compile_context>

<pallas_src>
import jax
import jax.numpy as jnp
from jax.experimental import pallas as pl
from jax.experimental.pallas import tpu as pltpu

# ----------------------------- configuration ------------------------------
B, CIN, H, W = 2, 4, 16, 16          # small NCHW input, like the torch module
HIDDEN = 32                          # hidden width of the synthetic head
N_CLASSES = 8                        # small class count (torch default is 80)
C_DET = 4 + N_CLASSES                # box(4) + class scores
N = H * W                            # 256 candidate boxes
BN = B * N                           # 512 lanes: batch collapsed onto lane axis
MAX_OBJ = 100
IOU_THRES = 0.45                     # TRT plugin attribute; placeholder NMS ignores it
SCORE_THRES = 0.25


# ----------------------- fused Pallas kernel (one call) ---------------------
def end2end_kernel(x_ref, w1_ref, w2_ref, out_ref):
    """Fused: synthetic 1x1-conv detection head (per-pixel MLP, channels-first)
    + ONNX_TRT box/score split + per-box class max/argmax.

    Channels-first with the batch folded onto the lane axis (B*N = 512 lanes):
    one matmul per layer, all stores lane-dense and 8-sublane aligned."""
    # Collapse batch onto the lane axis: (CIN, B*N) -- in-VMEM concat, ~4 KB.
    xcat = jnp.concatenate([x_ref[b] for b in range(B)], axis=-1)      # (CIN, BN) f32

    ones_row = jnp.ones((1, BN), jnp.bfloat16)                         # bias lane

    # Layer 1: bias folded into w1 via the appended ones row; bf16 MXU operands.
    x_aug = jnp.concatenate([xcat.astype(jnp.bfloat16), ones_row], axis=0)   # (CIN+1, BN)
    h = jnp.dot(w1_ref[...], x_aug, preferred_element_type=jnp.float32)      # (HIDDEN, BN)
    h = h * jax.nn.sigmoid(h)                                          # SiLU in f32

    # Layer 2: same bias-folding trick.
    h_aug = jnp.concatenate([h.astype(jnp.bfloat16), ones_row], axis=0)      # (HIDDEN+1, BN)
    y = jnp.dot(w2_ref[...], h_aug, preferred_element_type=jnp.float32)      # (C_DET, BN)

    # ONNX_TRT.forward split: bboxes = x[..., 0:4], scores = x[..., 4:]
    boxes = y[0:4, :]                                                   # (4, BN)
    scores = y[4:, :]                                                   # (N_CLASSES, BN)
    max_s = jnp.max(scores, axis=0, keepdims=True)                      # (1, BN)
    cls_iota = jax.lax.broadcasted_iota(jnp.int32, scores.shape, 0)
    cls = jnp.min(jnp.where(scores >= max_s, cls_iota, N_CLASSES),
                  axis=0, keepdims=True)                                # first-hit argmax

    # Single 8-sublane-aligned slab: one unmasked store, one writeback DMA.
    # Row 5 holds the class id as f32 (values 0..N_CLASSES-1 are exact in f32).
    slab = jnp.concatenate(
        [boxes, max_s, cls.astype(jnp.float32), jnp.zeros((2, BN), jnp.float32)],
        axis=0)                                                         # (8, BN)
    out_ref[...] = slab


def run_end2end(x_cf, w1_aug, w2_aug):
    """x_cf: (B, CIN, N) channels-first (pure reshape of NCHW, no transpose).
    w1_aug: (HIDDEN, CIN+1) bf16, w2_aug: (C_DET, HIDDEN+1) bf16 (bias folded)."""
    return pl.pallas_call(
        end2end_kernel,
        out_shape=jax.ShapeDtypeStruct((8, BN), jnp.float32),
        in_specs=[
            pl.BlockSpec(memory_space=pltpu.MemorySpace.VMEM),
            pl.BlockSpec(memory_space=pltpu.MemorySpace.VMEM),
            pl.BlockSpec(memory_space=pltpu.MemorySpace.VMEM),
        ],
        out_specs=pl.BlockSpec(memory_space=pltpu.MemorySpace.VMEM),
    )(x_cf, w1_aug, w2_aug)


# ------------------------------- End2End -----------------------------------
def make_params():
    """Deterministic synthetic weights for the detection head, with the bias
    folded in as an extra column and pre-cast to bf16 for the MXU."""
    k = jax.random.PRNGKey(42)
    k1, k2 = jax.random.split(k)
    w1 = jax.random.normal(k1, (HIDDEN, CIN), jnp.float32) * 0.1
    b1 = jnp.zeros((HIDDEN, 1), jnp.float32)
    w2 = jax.random.normal(k2, (C_DET, HIDDEN), jnp.float32) * 0.1
    b2 = jnp.zeros((C_DET, 1), jnp.float32)
    w1_aug = jnp.concatenate([w1, b1], axis=1).astype(jnp.bfloat16)   # (HIDDEN, CIN+1)
    w2_aug = jnp.concatenate([w2, b2], axis=1).astype(jnp.bfloat16)   # (C_DET, HIDDEN+1)
    return w1_aug, w2_aug


@jax.jit
def end2end_forward(x_nchw, w1_aug, w2_aug):
    # self.model(x): synthetic YOLO head emitting (B, C_det, H*W). The
    # x.permute(0, 2, 1) of ONNX_TRT.forward and the head's internal layout
    # cancel, so the fused kernel consumes channels-first (B, CIN, N) directly
    # (a pure reshape of NCHW -- no transpose HBM pass).
    x_cf = x_nchw.reshape(B, CIN, N)
    slab = run_end2end(x_cf, w1_aug, w2_aug)          # (8, B*N)

    boxes_cf = slab[0:4].reshape(4, B, N)             # (4, B, N)
    max_s = slab[4].reshape(B, N)                     # (B, N)
    cls_id = jnp.round(slab[5]).astype(jnp.int32).reshape(B, N)   # exact round-trip

    # TODO(synk): TRT::EfficientNMS_TRT is an external plugin whose PyTorch
    # fallback emits random output; emulate a deterministic selection from the
    # kernel-computed boxes/scores instead of real NMS (no sort / IoU suppression).
    num_det = jnp.minimum(
        jnp.sum((max_s > SCORE_THRES).astype(jnp.int32), axis=1, keepdims=True),
        MAX_OBJ).astype(jnp.int32)                                   # (B, 1) int32
    det_boxes = jnp.transpose(boxes_cf[:, :, :MAX_OBJ], (1, 2, 0))   # (B, 100, 4) f32
    det_scores = max_s[:, :MAX_OBJ]                                  # (B, 100)    f32
    det_classes = cls_id[:, :MAX_OBJ]                                # (B, 100)    i32
    return num_det, det_boxes, det_scores, det_classes


# --------------------------------- main -------------------------------------
if __name__ == "__main__":
    key = jax.random.PRNGKey(0)
    x = jax.random.normal(key, (B, CIN, H, W), jnp.float32)   # NCHW, like torch
    params = make_params()

    num_det, det_boxes, det_scores, det_classes = end2end_forward(x, *params)
    jax.block_until_ready((num_det, det_boxes, det_scores, det_classes))

    assert num_det.shape == (B, 1) and num_det.dtype == jnp.int32
    assert det_boxes.shape == (B, MAX_OBJ, 4) and det_boxes.dtype == jnp.float32
    assert det_scores.shape == (B, MAX_OBJ) and det_scores.dtype == jnp.float32
    assert det_classes.shape == (B, MAX_OBJ) and det_classes.dtype == jnp.int32
    assert bool(jnp.all(det_classes >= 0)) and bool(jnp.all(det_classes < N_CLASSES))
    print("KERNEL_OK")
</pallas_src>

<mosaic_0001>
module attributes {stable_mosaic.version = 11 : i64} {
  func.func @end2end_kernel(%arg0: memref<2x4x256xf32, #tpu.memory_space<vmem>>, %arg1: memref<32x5xbf16, #tpu.memory_space<vmem>>, %arg2: memref<12x33xbf16, #tpu.memory_space<vmem>>, %arg3: memref<8x512xf32, #tpu.memory_space<vmem>>) attributes {dimension_semantics = [], scalar_prefetch = 0 : i64, scratch_operands = 0 : i64, tpu.core_type = #tpu.core_type<tc>} {
    %c0 = arith.constant 0 : index
    %c0_0 = arith.constant 0 : index
    %c0_1 = arith.constant 0 : index
    %0 = vector.load %arg0[%c0, %c0_0, %c0_1] : memref<2x4x256xf32, #tpu.memory_space<vmem>>, vector<1x4x256xf32>
    %1 = vector.shape_cast %0 : vector<1x4x256xf32> to vector<4x256xf32>
    %c1 = arith.constant 1 : index
    %c0_2 = arith.constant 0 : index
    %c0_3 = arith.constant 0 : index
    %2 = vector.load %arg0[%c1, %c0_2, %c0_3] : memref<2x4x256xf32, #tpu.memory_space<vmem>>, vector<1x4x256xf32>
    %3 = vector.shape_cast %2 : vector<1x4x256xf32> to vector<4x256xf32>
    %4 = tpu.concatenate %1, %3 in 1 : vector<4x256xf32>, vector<4x256xf32> -> vector<4x512xf32>
    %cst = arith.constant 1.000000e+00 : bf16
    %5 = vector.broadcast %cst : bf16 to vector<1x512xbf16>
    %6 = arith.truncf %4 : vector<4x512xf32> to vector<4x512xbf16>
    %7 = tpu.concatenate %6, %5 in 0 : vector<4x512xbf16>, vector<1x512xbf16> -> vector<5x512xbf16>
    %c0_4 = arith.constant 0 : index
    %c0_5 = arith.constant 0 : index
    %8 = vector.load %arg1[%c0_4, %c0_5] : memref<32x5xbf16, #tpu.memory_space<vmem>>, vector<32x5xbf16>
    %cst_6 = arith.constant dense<0.000000e+00> : vector<32x512xf32>
    %9 = tpu.matmul %8, %7, %cst_6 {dimension_numbers = #tpu.dot_dimension_numbers<[1], [0], [0], [1], [0, 0, 1, 1], [], []>} : vector<32x5xbf16>, vector<5x512xbf16>, vector<32x512xf32> -> vector<32x512xf32>
    %10 = arith.negf %9 : vector<32x512xf32>
    %11 = math.exp %10 : vector<32x512xf32>
    %cst_7 = arith.constant 1.000000e+00 : f32
    %12 = vector.broadcast %cst_7 : f32 to vector<32x512xf32>
    %13 = arith.addf %12, %11 : vector<32x512xf32>
    %14 = arith.divf %12, %13 : vector<32x512xf32>
    %15 = arith.mulf %9, %14 : vector<32x512xf32>
    %16 = arith.truncf %15 : vector<32x512xf32> to vector<32x512xbf16>
    %17 = tpu.concatenate %16, %5 in 0 : vector<32x512xbf16>, vector<1x512xbf16> -> vector<33x512xbf16>
    %c0_8 = arith.constant 0 : index
    %c0_9 = arith.constant 0 : index
    %18 = vector.load %arg2[%c0_8, %c0_9] : memref<12x33xbf16, #tpu.memory_space<vmem>>, vector<12x33xbf16>
    %cst_10 = arith.constant dense<0.000000e+00> : vector<12x512xf32>
    %19 = tpu.matmul %18, %17, %cst_10 {dimension_numbers = #tpu.dot_dimension_numbers<[1], [0], [0], [1], [0, 0, 1, 1], [], []>} : vector<12x33xbf16>, vector<33x512xbf16>, vector<12x512xf32> -> vector<12x512xf32>
    %20 = vector.extract_strided_slice %19 {offsets = [0, 0], sizes = [4, 512], strides = [1, 1]} : vector<12x512xf32> to vector<4x512xf32>
    %21 = vector.extract_strided_slice %19 {offsets = [4, 0], sizes = [8, 512], strides = [1, 1]} : vector<12x512xf32> to vector<8x512xf32>
    %cst_11 = arith.constant dense<0xFF800000> : vector<512xf32>
    %22 = vector.multi_reduction <maximumf>, %21, %cst_11 [0] : vector<8x512xf32> to vector<512xf32>
    %23 = vector.shape_cast %22 : vector<512xf32> to vector<1x512xf32>
    %24 = tpu.iota {dimensions = array<i32: 0>} : vector<8x512xi32>
    %25 = vector.broadcast %23 : vector<1x512xf32> to vector<8x512xf32>
    %26 = arith.cmpf oge, %21, %25 : vector<8x512xf32>
    %c8_i32 = arith.constant 8 : i32
    %27 = vector.broadcast %c8_i32 : i32 to vector<8x512xi32>
    %28 = arith.select %26, %24, %27 : vector<8x512xi1>, vector<8x512xi32>
    %cst_12 = arith.constant dense<2147483647> : vector<512xi32>
    %29 = vector.multi_reduction <minsi>, %28, %cst_12 [0] : vector<8x512xi32> to vector<512xi32>
    %30 = vector.shape_cast %29 : vector<512xi32> to vector<1x512xi32>
    %31 = arith.sitofp %30 : vector<1x512xi32> to vector<1x512xf32>
    %cst_13 = arith.constant 0.000000e+00 : f32
    %32 = vector.broadcast %cst_13 : f32 to vector<2x512xf32>
    %33 = tpu.concatenate %20, %23, %31, %32 in 0 : vector<4x512xf32>, vector<1x512xf32>, vector<1x512xf32>, vector<2x512xf32> -> vector<8x512xf32>
    %c0_14 = arith.constant 0 : index
    %c0_15 = arith.constant 0 : index
    %34 = vector.load %arg3[%c0_14, %c0_15] : memref<8x512xf32, #tpu.memory_space<vmem>>, vector<8x512xf32>
    tpu.vector_store %arg3[%c0_14, %c0_15], %33 {strides = array<i32>} : memref<8x512xf32, #tpu.memory_space<vmem>>, vector<8x512xf32>,
    return
  }
}

</mosaic_0001>

<llo_original>
// kernel: squeeze.2
$region0: #{squeeze.2}
  %s0 = inlined_call_operand.vmem [shape: f32[512], index: 0, kind: input, shape index: {}]
  %s1 = inlined_call_operand.vmem [shape: f32[2,256], index: 1, kind: output, shape index: {}]
  $region1: #{squeeze.2} parent=0
    #allocation0 [shape = 'u8[8192]{0}', space=vmem, size = 0x2000, scoped, tag = 'scoped mem for output reshape']
    #allocation1 [shape = 'u8[4096]{0}', space=vmem, size = 0x1000, scoped, tag = 'scoped mem for input reshape']
    %s3 = sshll.u32 1, 4
    %s4 = ssub.s32 %s3, 1
    %v5 = vld [vmem:[%s0] sm:%s4]
    %6 = vst [vmem:[#allocation1] sm:%s4] %v5
    %v7 = vld [vmem:[#allocation1] sm:$0xf]
    %8 = vst [vmem:[#allocation0] ss:$8 sm:$0x3] %v7
    %s9 = scalar_lea.vmem [#allocation0], 4294967281
    %10 = vst [vmem:[%s9] ss:$8 sm:$0xc] %v7
    %s12 = sshll.u32 1, 2
    %s13 = ssub.s32 %s12, 1
    %v15 = vld [vmem:[#allocation0] sm:%s13]
    %s16 = sshll.u32 1, 2
    %s17 = ssub.s32 %s16, 1
    %18 = vst [vmem:[%s1] sm:%s17] %v15
    %s19 = scalar_lea.vmem [#allocation0], 8
    %v20 = vld [vmem:[%s19] sm:%s13]
    %s21 = sshll.u32 1, 2
    %s22 = ssub.s32 %s21, 1
    %s23 = scalar_lea.vmem %s1, 2
    %24 = vst [vmem:[%s23] sm:%s22] %v20

// kernel: end2end_forward.1
$region0: #{end2end_forward.1}
  #allocation0 [shape = 'u32[]', space=smem, size = 0x4, offset = 0x4, fixed_abs, tag = 'smem constant byte address 0x4 - core index']
  #allocation1 [shape = 'u32[144,128]{1,0:T(1,128)}', space=vmem, size = 0x12000, scoped, tag = 'internal scratch']
  %s0 = inlined_call_operand.vmem [shape: f32[2,4,256], index: 0, kind: input, shape index: {}]
  %s1 = inlined_call_operand.vmem [shape: bf16[32,5], index: 1, kind: input, shape index: {}]
  %s2 = inlined_call_operand.vmem [shape: bf16[12,33], index: 2, kind: input, shape index: {}]
  %s3 = inlined_call_operand.vmem [shape: f32[8,512], index: 3, kind: output, shape index: {}]
  %s4 = sld [smem:[#allocation0]]
  $region22: #{end2end_forward.1} parent=0
    _
  %s6 = ssub.s32 1, %s4
  %s7 = scalar_select 0, %s6, %s4
  // Predicated region
  $region2: #{end2end_forward.1} parent=0 // pred_check
    _
  $region3: #{end2end_forward.1} parent=0 // pred_check_branch
    %9 = sbr.rel (0) target = $region5
  $region4: #{end2end_forward.1} parent=0 // pred_region
    _
  $region5: #{end2end_forward.1} parent=0 // pred_fallthru
    _
  // Predicated region
  $region6: #{end2end_forward.1} parent=0 // pred_check
    _
  $region7: #{end2end_forward.1} parent=0 // pred_check_branch
    %11 = sbr.rel (0) target = $region9
  $region8: #{end2end_forward.1} parent=0 // pred_region
    _
  $region9: #{end2end_forward.1} parent=0 // pred_fallthru
    _
  // Predicated region
  $region10: #{end2end_forward.1} parent=0 // pred_check
    _
  $region11: #{end2end_forward.1} parent=0 // pred_check_branch
    %13 = sbr.rel (0) target = $region13
  $region12: #{end2end_forward.1} parent=0 // pred_region
    _
  $region13: #{end2end_forward.1} parent=0 // pred_fallthru
    _
  %v16 = vld [vmem:[%s0] sm:$0xff]
  %s17 = scalar_lea.vmem %s0, 8
  %v18 = vld [vmem:[%s17] sm:$0xff]
  %v20 = vcombine.high %v16, %v16
  %v23 = vcombine.high %v18, %v18
  %v25 = vpack.c.bf16 %v16, %v16
  %v26 = vpack.c.bf16 %v20, %v20
  %v27 = vpack.c.bf16 %v18, %v18
  %v28 = vpack.c.bf16 %v23, %v23
  %vm29 = vcmask 1041408
  %v32 = vsel %vm29, %v25, 1065369472
  %v34 = vsel %vm29, %v26, 1065369472
  %v36 = vsel %vm29, %v27, 1065369472
  %v38 = vsel %vm29, %v28, 1065369472
  %v39 = vld [vmem:[%s1] sm:$0xf]
  %v40 = vld [vmem:[%s1 + $0x4] sm:$0xf]
  %v41 = vld [vmem:[%s1 + $0x8] sm:$0xf]
  %v42 = vld [vmem:[%s1 + $0xc] sm:$0xf]
  %v47 = vunpack.c.l.b16 %v39
  %v48 = vunpack.c.l.b16 %v40
  %v49 = vunpack.c.l.b16 %v41
  %v50 = vunpack.c.l.b16 %v42
  %v51 = vpack.c.b16 %v48, %v47
  %v52 = vpack.c.b16 %v50, %v49
  %vm53 = vcmask 39936
  %v55 = vsel %vm53, %v51, 0
  %v58 = vsel %vm53, %v52, 0
  %vm60 = vcmask 1042432
  %v61 = vsel %vm29, 4294967295, 65535
  %v62 = vsel %vm60, %v61, 0
  %v63 = vand.u32 %v32, %v62
  %v65 = vand.u32 %v34, %v62
  %v67 = vand.u32 %v36, %v62
  %v69 = vand.u32 %v38, %v62
  %71 = vmatprep.subr.bf16.mxu0 0
  %72 = vmatpush1.bf16.msra.mxu0 0
  %73 = vmatprep.subr.bf16.mxu0 0
  %74 = vmatpush1.bf16.msra.mxu0 0
  %75 = vmatprep.subr.bf16.mxu0 0
  %76 = vmatpush1.bf16.msra.mxu0 0
  %77 = vmatprep.subr.bf16.mxu0 0
  %78 = vmatpush1.bf16.msra.mxu0 0
  %79 = vmatprep.subr.bf16.mxu0 0
  %80 = vmatpush1.bf16.msra.mxu0 0
  %81 = vmatprep.subr.bf16.mxu0 0
  %82 = vmatpush1.bf16.msra.mxu0 0
  %83 = vmatprep.subr.bf16.mxu0 0
  %84 = vmatpush1.bf16.msra.mxu0 0
  %85 = vmatprep.subr.bf16.mxu0 %v65
  %86 = vmatpush1.bf16.msra.mxu0 %v63
  %87 = vmatprep.subr.bf16.mxu0 0
  %88 = vmatpush2.bf16.msra.mxu0 0
  %89 = vmatprep.subr.bf16.mxu0 0
  %90 = vmatpush2.bf16.msra.mxu0 0
  %91 = vmatprep.subr.bf16.mxu0 0
  %92 = vmatpush2.bf16.msra.mxu0 0
  %93 = vmatprep.subr.bf16.mxu0 0
  %94 = vmatpush2.bf16.msra.mxu0 0
  %95 = vmatprep.subr.bf16.mxu0 0
  %96 = vmatpush2.bf16.msra.mxu0 0
  %97 = vmatprep.subr.bf16.mxu0 0
  %98 = vmatpush2.bf16.msra.mxu0 0
  %99 = vmatprep.subr.bf16.mxu0 0
  %100 = vmatpush2.bf16.msra.mxu0 0
  %101 = vmatprep.subr.bf16.mxu0 0
  %102 = vmatpush2.bf16.msra.mxu0 0
  %103 = vmatprep.mubr.bf16.mxu0 0
  %104 = vmatmul.mubr.bf16.gmra.mxu0 %v55
  %v105 = vpop.f32.mrf.mxu0
  %v106 = vadd.f32 0.0, %v105
  %v107 = vpop.f32.mrf.mxu0
  %v108 = vadd.f32 0.0, %v107
  %v109 = vpop.f32.mrf.mxu0
  %v110 = vadd.f32 0.0, %v109
  %v111 = vpop.f32.mrf.mxu0
  %v112 = vadd.f32 0.0, %v111
  %113 = vmatprep.mubr.bf16.mxu0 0
  %114 = vmatmul.mubr.bf16.gmra.mxu0 %v58
  %v115 = vpop.f32.mrf.mxu0
  %v116 = vadd.f32 0.0, %v115
  %v117 = vpop.f32.mrf.mxu0
  %v118 = vadd.f32 0.0, %v117
  %v119 = vpop.f32.mrf.mxu0
  %v120 = vadd.f32 0.0, %v119
  %v121 = vpop.f32.mrf.mxu0
  %v122 = vadd.f32 0.0, %v121
  %123 = vdwg.mxu0
  %124 = vmatprep.subr.bf16.mxu0 0
  %125 = vmatpush1.bf16.msra.mxu0 0
  %126 = vmatprep.subr.bf16.mxu0 0
  %127 = vmatpush1.bf16.msra.mxu0 0
  %128 = vmatprep.subr.bf16.mxu0 0
  %129 = vmatpush1.bf16.msra.mxu0 0
  %130 = vmatprep.subr.bf16.mxu0 0
  %131 = vmatpush1.bf16.msra.mxu0 0
  %132 = vmatprep.subr.bf16.mxu0 0
  %133 = vmatpush1.bf16.msra.mxu0 0
  %134 = vmatprep.subr.bf16.mxu0 0
  %135 = vmatpush1.bf16.msra.mxu0 0
  %136 = vmatprep.subr.bf16.mxu0 0
  %137 = vmatpush1.bf16.msra.mxu0 0
  %138 = vmatprep.subr.bf16.mxu0 %v69
  %139 = vmatpush1.bf16.msra.mxu0 %v67
  %140 = vmatprep.subr.bf16.mxu0 0
  %141 = vmatpush2.bf16.msra.mxu0 0
  %142 = vmatprep.subr.bf16.mxu0 0
  %143 = vmatpush2.bf16.msra.mxu0 0
  %144 = vmatprep.subr.bf16.mxu0 0
  %145 = vmatpush2.bf16.msra.mxu0 0
  %146 = vmatprep.subr.bf16.mxu0 0
  %147 = vmatpush2.bf16.msra.mxu0 0
  %148 = vmatprep.subr.bf16.mxu0 0
  %149 = vmatpush2.bf16.msra.mxu0 0
  %150 = vmatprep.subr.bf16.mxu0 0
  %151 = vmatpush2.bf16.msra.mxu0 0
  %152 = vmatprep.subr.bf16.mxu0 0
  %153 = vmatpush2.bf16.msra.mxu0 0
  %154 = vmatprep.subr.bf16.mxu0 0
  %155 = vmatpush2.bf16.msra.mxu0 0
  %156 = vmatprep.mubr.bf16.mxu0 0
  %157 = vmatmul.mubr.bf16.gmra.mxu0 %v55
  %v158 = vpop.f32.mrf.mxu0
  %v159 = vadd.f32 0.0, %v158
  %v160 = vpop.f32.mrf.mxu0
  %v161 = vadd.f32 0.0, %v160
  %v162 = vpop.f32.mrf.mxu0
  %v163 = vadd.f32 0.0, %v162
  %v164 = vpop.f32.mrf.mxu0
  %v165 = vadd.f32 0.0, %v164
  %166 = vmatprep.mubr.bf16.mxu0 0
  %167 = vmatmul.mubr.bf16.gmra.mxu0 %v58
  %v168 = vpop.f32.mrf.mxu0
  %v169 = vadd.f32 0.0, %v168
  %v170 = vpop.f32.mrf.mxu0
  %v171 = vadd.f32 0.0, %v170
  %v172 = vpop.f32.mrf.mxu0
  %v173 = vadd.f32 0.0, %v172
  %v174 = vpop.f32.mrf.mxu0
  %v175 = vadd.f32 0.0, %v174
  %176 = vdwg.mxu0
  %v177 = vxor.u32 %v106, 2147483648
  %v178 = vxor.u32 %v108, 2147483648
  %v179 = vxor.u32 %v159, 2147483648
  %v180 = vxor.u32 %v161, 2147483648
  %v181 = vxor.u32 %v110, 2147483648
  %v182 = vxor.u32 %v112, 2147483648
  %v183 = vxor.u32 %v163, 2147483648
  %v184 = vxor.u32 %v165, 2147483648
  %v185 = vxor.u32 %v116, 2147483648
  %v186 = vxor.u32 %v118, 2147483648
  %v187 = vxor.u32 %v169, 2147483648
  %v188 = vxor.u32 %v171, 2147483648
  %v189 = vxor.u32 %v120, 2147483648
  %v190 = vxor.u32 %v122, 2147483648
  %v191 = vxor.u32 %v173, 2147483648
  %v192 = vxor.u32 %v175, 2147483648
  %v193 = vmul.f32 %v177, 1.442695
  %v194 = vpow.pop %v193
  %v195 = vmul.f32 %v178, 1.442695
  %v196 = vpow.pop %v195
  %v197 = vmul.f32 %v179, 1.442695
  %v198 = vpow.pop %v197
  %v199 = vmul.f32 %v180, 1.442695
  %v200 = vpow.pop %v199
  %v201 = vmul.f32 %v181, 1.442695
  %v202 = vpow.pop %v201
  %v203 = vmul.f32 %v182, 1.442695
  %v204 = vpow.pop %v203
  %v205 = vmul.f32 %v183, 1.442695
  %v206 = vpow.pop %v205
  %v207 = vmul.f32 %v184, 1.442695
  %v208 = vpow.pop %v207
  %v209 = vmul.f32 %v185, 1.442695
  %v210 = vpow.pop %v209
  %v211 = vmul.f32 %v186, 1.442695
  %v212 = vpow.pop %v211
  %v213 = vmul.f32 %v187, 1.442695
  %v214 = vpow.pop %v213
  %v215 = vmul.f32 %v188, 1.442695
  %v216 = vpow.pop %v215
  %v217 = vmul.f32 %v189, 1.442695
  %v218 = vpow.pop %v217
  %v219 = vmul.f32 %v190, 1.442695
  %v220 = vpow.pop %v219
  %v221 = vmul.f32 %v191, 1.442695
  %v222 = vpow.pop %v221
  %v223 = vmul.f32 %v192, 1.442695
  %v224 = vpow.pop %v223
  %v225 = vadd.f32 %v194, 1.0
  %v226 = vadd.f32 %v196, 1.0
  %v227 = vadd.f32 %v198, 1.0
  %v228 = vadd.f32 %v200, 1.0
  %v229 = vadd.f32 %v202, 1.0
  %v230 = vadd.f32 %v204, 1.0
  %v231 = vadd.f32 %v206, 1.0
  %v232 = vadd.f32 %v208, 1.0
  %v233 = vadd.f32 %v210, 1.0
  %v234 = vadd.f32 %v212, 1.0
  %v235 = vadd.f32 %v214, 1.0
  %v236 = vadd.f32 %v216, 1.0
  %v237 = vadd.f32 %v218, 1.0
  %v238 = vadd.f32 %v220, 1.0
  %v239 = vadd.f32 %v222, 1.0
  %v240 = vadd.f32 %v224, 1.0
  %v241 = vrcp.pop %v225
  %v242 = vmul.f32 1.0, %v241
  %v243 = vrcp.pop %v226
  %v244 = vmul.f32 1.0, %v243
  %v245 = vrcp.pop %v227
  %v246 = vmul.f32 1.0, %v245
  %v247 = vrcp.pop %v228
  %v248 = vmul.f32 1.0, %v247
  %v249 = vrcp.pop %v229
  %v250 = vmul.f32 1.0, %v249
  %v251 = vrcp.pop %v230
  %v252 = vmul.f32 1.0, %v251
  %v253 = vrcp.pop %v231
  %v254 = vmul.f32 1.0, %v253
  %v255 = vrcp.pop %v232
  %v256 = vmul.f32 1.0, %v255
  %v257 = vrcp.pop %v233
  %v258 = vmul.f32 1.0, %v257
  %v259 = vrcp.pop %v234
  %v260 = vmul.f32 1.0, %v259
  %v261 = vrcp.pop %v235
  %v262 = vmul.f32 1.0, %v261
  %v263 = vrcp.pop %v236
  %v264 = vmul.f32 1.0, %v263
  %v265 = vrcp.pop %v237
  %v266 = vmul.f32 1.0, %v265
  %v267 = vrcp.pop %v238
  %v268 = vmul.f32 1.0, %v267
  %v269 = vrcp.pop %v239
  %v270 = vmul.f32 1.0, %v269
  %v271 = vrcp.pop %v240
  %v272 = vmul.f32 1.0, %v271
  %v273 = vmul.f32 %v106, %v242
  %v274 = vmul.f32 %v108, %v244
  %v275 = vmul.f32 %v159, %v246
  %v276 = vmul.f32 %v161, %v248
  %v277 = vmul.f32 %v110, %v250
  %v278 = vmul.f32 %v112, %v252
  %v279 = vmul.f32 %v163, %v254
  %v280 = vmul.f32 %v165, %v256
  %v281 = vmul.f32 %v116, %v258
  %v282 = vmul.f32 %v118, %v260
  %v283 = vmul.f32 %v169, %v262
  %v284 = vmul.f32 %v171, %v264
  %v285 = vmul.f32 %v120, %v266
  %v286 = vmul.f32 %v122, %v268
  %v287 = vmul.f32 %v173, %v270
  %v288 = vmul.f32 %v175, %v272
  %v289 = vpack.c.bf16 %v277, %v273
  %v290 = vpack.c.bf16 %v278, %v274
  %v291 = vpack.c.bf16 %v279, %v275
  %v292 = vpack.c.bf16 %v280, %v276
  %v293 = vpack.c.bf16 %v285, %v281
  %v294 = vpack.c.bf16 %v286, %v282
  %v295 = vpack.c.bf16 %v287, %v283
  %v296 = vpack.c.bf16 %v288, %v284
  %v297 = vld [vmem:[%s2] sm:$0xf]
  %v298 = vld [vmem:[%s2 + $0x4] sm:$0x3]
  %v301 = vunpack.c.l.b16 %v297
  %v302 = vunpack.c.l.b16 %v298
  %v303 = vpack.c.b16 %v302, %v301
  %vm304 = vcmask 269312
  %v306 = vsel %vm304, %v303, 0
  %vm308 = vcmask 1040384
  %v309 = vsel 0, 4294967295, 65535
  %v310 = vsel %vm308, %v309, 0
  %v311 = vand.u32 1065369472, %v310
  %313 = vmatprep.subr.bf16.mxu0 0
  %314 = vmatpush1.bf16.msra.mxu0 0
  %315 = vmatprep.subr.bf16.mxu0 0
  %316 = vmatpush1.bf16.msra.mxu0 0
  %317 = vmatprep.subr.bf16.mxu0 0
  %318 = vmatpush1.bf16.msra.mxu0 0
  %319 = vmatprep.subr.bf16.mxu0 0
  %320 = vmatpush1.bf16.msra.mxu0 0
  %321 = vmatprep.subr.bf16.mxu0 0
  %322 = vmatpush1.bf16.msra.mxu0 0
  %323 = vmatprep.subr.bf16.mxu0 %v311
  %324 = vmatpush1.bf16.msra.mxu0 %v311
  %325 = vmatprep.subr.bf16.mxu0 %v294
  %326 = vmatpush1.bf16.msra.mxu0 %v293
  %327 = vmatprep.subr.bf16.mxu0 %v290
  %328 = vmatpush1.bf16.msra.mxu0 %v289
  %329 = vmatprep.subr.bf16.mxu0 0
  %330 = vmatpush2.bf16.msra.mxu0 0
  %331 = vmatprep.subr.bf16.mxu0 0
  %332 = vmatpush2.bf16.msra.mxu0 0
  %333 = vmatprep.subr.bf16.mxu0 0
  %334 = vmatpush2.bf16.msra.mxu0 0
  %335 = vmatprep.subr.bf16.mxu0 0
  %336 = vmatpush2.bf16.msra.mxu0 0
  %337 = vmatprep.subr.bf16.mxu0 0
  %338 = vmatpush2.bf16.msra.mxu0 0
  %339 = vmatprep.subr.bf16.mxu0 0
  %340 = vmatpush2.bf16.msra.mxu0 0
  %341 = vmatprep.subr.bf16.mxu0 0
  %342 = vmatpush2.bf16.msra.mxu0 0
  %343 = vmatprep.subr.bf16.mxu0 0
  %344 = vmatpush2.bf16.msra.mxu0 0
  %345 = vmatprep.mubr.bf16.mxu0 0
  %346 = vmatmul.mubr.bf16.gmra.mxu0 %v306
  %v347 = vpop.f32.mrf.mxu0
  %v348 = vadd.f32 0.0, %v347
  %v349 = vpop.f32.mrf.mxu0
  %v350 = vadd.f32 0.0, %v349
  %v351 = vpop.f32.mrf.mxu0
  %v352 = vadd.f32 0.0, %v351
  %v353 = vpop.f32.mrf.mxu0
  %v354 = vadd.f32 0.0, %v353
  %355 = vdwg.mxu0
  %356 = vmatprep.subr.bf16.mxu0 0
  %357 = vmatpush1.bf16.msra.mxu0 0
  %358 = vmatprep.subr.bf16.mxu0 0
  %359 = vmatpush1.bf16.msra.mxu0 0
  %360 = vmatprep.subr.bf16.mxu0 0
  %361 = vmatpush1.bf16.msra.mxu0 0
  %362 = vmatprep.subr.bf16.mxu0 0
  %363 = vmatpush1.bf16.msra.mxu0 0
  %364 = vmatprep.subr.bf16.mxu0 0
  %365 = vmatpush1.bf16.msra.mxu0 0
  %366 = vmatprep.subr.bf16.mxu0 %v311
  %367 = vmatpush1.bf16.msra.mxu0 %v311
  %368 = vmatprep.subr.bf16.mxu0 %v296
  %369 = vmatpush1.bf16.msra.mxu0 %v295
  %370 = vmatprep.subr.bf16.mxu0 %v292
  %371 = vmatpush1.bf16.msra.mxu0 %v291
  %372 = vmatprep.subr.bf16.mxu0 0
  %373 = vmatpush2.bf16.msra.mxu0 0
  %374 = vmatprep.subr.bf16.mxu0 0
  %375 = vmatpush2.bf16.msra.mxu0 0
  %376 = vmatprep.subr.bf16.mxu0 0
  %377 = vmatpush2.bf16.msra.mxu0 0
  %378 = vmatprep.subr.bf16.mxu0 0
  %379 = vmatpush2.bf16.msra.mxu0 0
  %380 = vmatprep.subr.bf16.mxu0 0
  %381 = vmatpush2.bf16.msra.mxu0 0
  %382 = vmatprep.subr.bf16.mxu0 0
  %383 = vmatpush2.bf16.msra.mxu0 0
  %384 = vmatprep.subr.bf16.mxu0 0
  %385 = vmatpush2.bf16.msra.mxu0 0
  %386 = vmatprep.subr.bf16.mxu0 0
  %387 = vmatpush2.bf16.msra.mxu0 0
  %388 = vmatprep.mubr.bf16.mxu0 0
  %389 = vmatmul.mubr.bf16.gmra.mxu0 %v306
  %v390 = vpop.f32.mrf.mxu0
  %v391 = vadd.f32 0.0, %v390
  %v392 = vpop.f32.mrf.mxu0
  %v393 = vadd.f32 0.0, %v392
  %v394 = vpop.f32.mrf.mxu0
  %v395 = vadd.f32 0.0, %v394
  %v396 = vpop.f32.mrf.mxu0
  %v397 = vadd.f32 0.0, %v396
  %398 = vdwg.mxu0
  %vm399 = vcmask 1047556
  %v400 = vsel %vm399, %v348, -inf
  %vm401 = vcmask 1043456
  %v402 = vsel %vm401, %v352, -inf
  %v403 = vmax.f32 %v400, %v402
  %v404 = vrot.slane %v403, 4
  %v405 = vmax.f32 %v403, %v404
  %v406 = vrot.slane %v405, 2
  %v407 = vmax.f32 %v405, %v406
  %v408 = vrot.slane %v407, 1
  %v409 = vmax.f32 %v407, %v408
  %v410 = vsel %vm399, %v350, -inf
  %v411 = vsel %vm401, %v354, -inf
  %v412 = vmax.f32 %v410, %v411
  %v413 = vrot.slane %v412, 4
  %v414 = vmax.f32 %v412, %v413
  %v415 = vrot.slane %v414, 2
  %v416 = vmax.f32 %v414, %v415
  %v417 = vrot.slane %v416, 1
  %v418 = vmax.f32 %v416, %v417
  %v419 = vsel %vm399, %v391, -inf
  %v420 = vsel %vm401, %v395, -inf
  %v421 = vmax.f32 %v419, %v420
  %v422 = vrot.slane %v421, 4
  %v423 = vmax.f32 %v421, %v422
  %v424 = vrot.slane %v423, 2
  %v425 = vmax.f32 %v423, %v424
  %v426 = vrot.slane %v425, 1
  %v427 = vmax.f32 %v425, %v426
  %v428 = vsel %vm399, %v393, -inf
  %v429 = vsel %vm401, %v397, -inf
  %v430 = vmax.f32 %v428, %v429
  %v431 = vrot.slane %v430, 4
  %v432 = vmax.f32 %v430, %v431
  %v433 = vrot.slane %v432, 2
  %v434 = vmax.f32 %v432, %v433
  %v435 = vrot.slane %v434, 1
  %v436 = vmax.f32 %v434, %v435
  %v437 = vlaneseq
  %v438 = vshrl.u32 %v437, 7
  %vm439 = vcmp.ge.f32.partialorder %v348, %v409
  %vm440 = vcmp.ge.f32.partialorder %v350, %v418
  %vm441 = vcmp.ge.f32.partialorder %v391, %v427
  %vm442 = vcmp.ge.f32.partialorder %v393, %v436
  %vm443 = vcmp.ge.f32.partialorder %v352, %v409
  %vm444 = vcmp.ge.f32.partialorder %v354, %v418
  %vm445 = vcmp.ge.f32.partialorder %v395, %v427
  %vm446 = vcmp.ge.f32.partialorder %v397, %v436
  %v447 = vrot.slane %v438, 4
  %v448 = vsel %vm439, %v447, 8
  %v449 = vsel %vm440, %v447, 8
  %v450 = vsel %vm441, %v447, 8
  %v451 = vsel %vm442, %v447, 8
  %v452 = vsel %vm443, %v447, 8
  %v453 = vsel %vm444, %v447, 8
  %v454 = vsel %vm445, %v447, 8
  %v455 = vsel %vm446, %v447, 8
  %v456 = vsel %vm399, %v448, 2147483647
  %v457 = vsel %vm401, %v452, 2147483647
  %vm458 = vcmp.lt.s32.totalorder %v456, %v457
  %v459 = vsel %vm458, %v456, %v457
  %v460 = vrot.slane %v459, 4
  %vm461 = vcmp.lt.s32.totalorder %v459, %v460
  %v462 = vsel %vm461, %v459, %v460
  %v463 = vrot.slane %v462, 2
  %vm464 = vcmp.lt.s32.totalorder %v462, %v463
  %v465 = vsel %vm464, %v462, %v463
  %v466 = vrot.slane %v465, 1
  %vm467 = vcmp.lt.s32.totalorder %v465, %v466
  %v468 = vsel %vm467, %v465, %v466
  %v469 = vsel %vm399, %v449, 2147483647
  %v470 = vsel %vm401, %v453, 2147483647
  %vm471 = vcmp.lt.s32.totalorder %v469, %v470
  %v472 = vsel %vm471, %v469, %v470
  %v473 = vrot.slane %v472, 4
  %vm474 = vcmp.lt.s32.totalorder %v472, %v473
  %v475 = vsel %vm474, %v472, %v473
  %v476 = vrot.slane %v475, 2
  %vm477 = vcmp.lt.s32.totalorder %v475, %v476
  %v478 = vsel %vm477, %v475, %v476
  %v479 = vrot.slane %v478, 1
  %vm480 = vcmp.lt.s32.totalorder %v478, %v479
  %v481 = vsel %vm480, %v478, %v479
  %v482 = vsel %vm399, %v450, 2147483647
  %v483 = vsel %vm401, %v454, 2147483647
  %vm484 = vcmp.lt.s32.totalorder %v482, %v483
  %v485 = vsel %vm484, %v482, %v483
  %v486 = vrot.slane %v485, 4
  %vm487 = vcmp.lt.s32.totalorder %v485, %v486
  %v488 = vsel %vm487, %v485, %v486
  %v489 = vrot.slane %v488, 2
  %vm490 = vcmp.lt.s32.totalorder %v488, %v489
  %v491 = vsel %vm490, %v488, %v489
  %v492 = vrot.slane %v491, 1
  %vm493 = vcmp.lt.s32.totalorder %v491, %v492
  %v494 = vsel %vm493, %v491, %v492
  %v495 = vsel %vm399, %v451, 2147483647
  %v496 = vsel %vm401, %v455, 2147483647
  %vm497 = vcmp.lt.s32.totalorder %v495, %v496
  %v498 = vsel %vm497, %v495, %v496
  %v499 = vrot.slane %v498, 4
  %vm500 = vcmp.lt.s32.totalorder %v498, %v499
  %v501 = vsel %vm500, %v498, %v499
  %v502 = vrot.slane %v501, 2
  %vm503 = vcmp.lt.s32.totalorder %v501, %v502
  %v504 = vsel %vm503, %v501, %v502
  %v505 = vrot.slane %v504, 1
  %vm506 = vcmp.lt.s32.totalorder %v504, %v505
  %v507 = vsel %vm506, %v504, %v505
  %v508 = vcvt.s32.f32 %v468
  %v509 = vcvt.s32.f32 %v481
  %v510 = vcvt.s32.f32 %v494
  %v511 = vcvt.s32.f32 %v507
  %v512 = vsel %vm401, %v348, %v409
  %v513 = vsel %vm401, %v350, %v418
  %v514 = vsel %vm401, %v391, %v427
  %v515 = vsel %vm401, %v393, %v436
  %vm516 = vcmask 1044480
  %v517 = vsel %vm516, %v512, %v508
  %v518 = vsel %vm516, %v513, %v509
  %v519 = vsel %vm516, %v514, %v510
  %v520 = vsel %vm516, %v515, %v511
  %vm521 = vcmask 1045504
  %v522 = vsel %vm521, %v517, 0.0
  %v523 = vsel %vm521, %v518, 0.0
  %v524 = vsel %vm521, %v519, 0.0
  %v525 = vsel %vm521, %v520, 0.0
  %526 = vst [vmem:[%s3] sm:$0xff] %v522
  %527 = vst [vmem:[%s3 + $0x8] sm:$0xff] %v523
  %528 = vst [vmem:[%s3 + $0x10] sm:$0xff] %v524
  %529 = vst [vmem:[%s3 + $0x18] sm:$0xff] %v525
  // Predicated region
  $region14: #{end2end_forward.1} parent=0 // pred_check
    _
  $region15: #{end2end_forward.1} parent=0 // pred_check_branch
    %531 = sbr.rel (0) target = $region17
  $region16: #{end2end_forward.1} parent=0 // pred_region
    _
  $region17: #{end2end_forward.1} parent=0 // pred_fallthru
    _
  // Predicated region
  $region18: #{end2end_forward.1} parent=0 // pred_check
    _
  $region19: #{end2end_forward.1} parent=0 // pred_check_branch
    %533 = sbr.rel (0) target = $region21
  $region20: #{end2end_forward.1} parent=0 // pred_region
    _
  $region21: #{end2end_forward.1} parent=0 // pred_fallthru
    _

</llo_original>
